<compile_context>
chip_gen: v7x
topology: tpu7x:2x2x1
jax: 0.10.0
libtpu: 0.0.40
codegen_flags: <defaults>
</compile_context>

<pallas_src>
import jax
import jax.numpy as jnp
from jax.experimental import pallas as pl
from jax.experimental.pallas import tpu as pltpu

_D = 32                      # padded feature width (lanes)
_SLAB_ROWS = 6 * _D + 8      # 6 weight blocks of 32 rows + 8 bias rows = 200
_MAX_TB = 4096               # batch-tile cap (review: 2048-8192)


def _round_up(n, m):
    return ((n + m - 1) // m) * m


def _vae_kernel(x_ref, eps_ref, w_ref, out_ref):
    # x_ref   : (TB, 21)  raw input rows
    # eps_ref : (TB, 4)   reparameterisation noise
    # w_ref   : (200, 32) packed, zero-padded parameter slab (resident)
    # out_ref : (TB, 32)  lanes 0-20 = y, 24-27 = relu(mu), 28-31 = logvar
    TB = x_ref.shape[0]
    x = x_ref[...]
    eps = eps_ref[...]

    w1 = w_ref[0:32, :]        # Linear(21, 8)   rows 0-20 used, cols 0-7
    w2 = w_ref[32:64, :]       # Linear(8, 8)    rows 0-7,      cols 0-7
    wh = w_ref[64:96, :]       # fused heads: cols 24-27 = mu, cols 28-31 = logvar
    wd1 = w_ref[96:128, :]     # Linear(4, 8): weight duplicated at rows 24-27 & 28-31
    wd2 = w_ref[128:160, :]    # Linear(8, 8)    rows 0-7,      cols 0-7
    wd3 = w_ref[160:192, :]    # Linear(8, 21)   rows 0-7,      cols 0-20
    b = w_ref[192:200, :]      # (8, 32) bias rows
    b1, b2, bh, bd1, bd2, bd3 = b[0:1], b[1:2], b[2:3], b[3:4], b[4:5], b[5:6]

    relu = lambda a: jnp.maximum(a, 0.0)
    dot = lambda a, w: jnp.dot(a, w, preferred_element_type=jnp.float32)

    # Lane placement done in VMEM (no wrapper-side padded slabs):
    #   x32  : lanes 0-20 = x, 21-31 = 0   (w1 rows 21-31 are zero anyway)
    #   eps32: lanes 28-31 = eps (aligned with the logvar head lanes)
    x32 = jnp.concatenate([x, jnp.zeros((TB, _D - 21), jnp.float32)], axis=-1)
    eps32 = jnp.concatenate([jnp.zeros((TB, _D - 4), jnp.float32), eps], axis=-1)

    # ---- encoder ----
    h = relu(dot(x32, w1) + b1)
    h = relu(dot(h, w2) + b2)

    # ---- fused latent heads: lanes 24-27 = mu_raw, lanes 28-31 = logvar ----
    heads = dot(h, wh) + bh                 # lanes 0-23 are exactly zero
    lane = jax.lax.broadcasted_iota(jnp.int32, heads.shape, 1)
    is_mu = jnp.logical_and(lane >= 24, lane < 28)
    heads_out = jnp.where(is_mu, relu(heads), heads)   # [0 | relu(mu) | logvar]

    # ---- reparameterise without lane realignment ----
    # q lanes 24-27 = relu(mu), lanes 28-31 = eps * exp(0.5*logvar), rest 0.
    # wd1 holds Wd1 at rows 24-27 AND 28-31, so
    #   q @ wd1 == (relu(mu) + eps * sigma) @ Wd1 == z @ Wd1.
    q = jnp.where(is_mu, relu(heads), eps32 * jnp.exp(0.5 * heads))

    # ---- decoder ----
    d = relu(dot(q, wd1) + bd1)
    d = relu(dot(d, wd2) + bd2)
    y = dot(d, wd3) + bd3                   # lanes 21-31 exactly zero

    # ---- single merged output tile ----
    out_ref[...] = y + heads_out


def pack_params(p):
    """Pack all weights/biases into one zero-padded (200, 32) f32 slab."""
    def zblock():
        return jnp.zeros((_D, _D), jnp.float32)

    w1 = zblock().at[:21, :8].set(p["w1"])
    w2 = zblock().at[:8, :8].set(p["w2"])
    wh = zblock().at[:8, 24:28].set(p["wmu"]).at[:8, 28:32].set(p["wlv"])
    wd1 = zblock().at[24:28, :8].set(p["wd1"]).at[28:32, :8].set(p["wd1"])
    wd2 = zblock().at[:8, :8].set(p["wd2"])
    wd3 = zblock().at[:8, :21].set(p["wd3"])

    bias = jnp.zeros((8, _D), jnp.float32)
    bias = bias.at[0, :8].set(p["b1"])
    bias = bias.at[1, :8].set(p["b2"])
    bias = bias.at[2, 24:28].set(p["bmu"]).at[2, 28:32].set(p["blv"])
    bias = bias.at[3, :8].set(p["bd1"])
    bias = bias.at[4, :8].set(p["bd2"])
    bias = bias.at[5, :21].set(p["bd3"])

    return jnp.concatenate([w1, w2, wh, wd1, wd2, wd3, bias], axis=0)  # (200, 32)


def autoencoder_forward(x, eps, slab):
    """x: (B, 21) f32, eps: (B, 4) f32, slab: packed (200, 32) params."""
    B = x.shape[0]

    # Large batch tile (review): per-step overhead, not DMA, dominated at 256.
    # TB=4096 keeps total VMEM (double-buffered I/O + temporaries) well under
    # the 32 MiB limit we request below, which is safe on v5e/v6e/v7x alike.
    TB = min(_MAX_TB, _round_up(B, 8))
    B_pad = _round_up(B, TB)
    grid = (B_pad // TB,)
    # NOTE (v7x): at tiny demo batches the grid is a single step, so one of
    # the two TensorCores idles — accepted per review; large B gets many steps.

    if B_pad != B:  # only a (cheap) batch pad when B is not a tile multiple
        x = jnp.pad(x, ((0, B_pad - B), (0, 0)))
        eps = jnp.pad(eps, ((0, B_pad - B), (0, 0)))

    out = pl.pallas_call(
        _vae_kernel,
        out_shape=jax.ShapeDtypeStruct((B_pad, _D), jnp.float32),
        grid=grid,
        in_specs=[
            pl.BlockSpec((TB, 21), lambda i: (i, 0)),            # raw x rows
            pl.BlockSpec((TB, 4), lambda i: (i, 0)),             # raw eps rows
            pl.BlockSpec((_SLAB_ROWS, _D), lambda i: (0, 0)),    # resident params
        ],
        out_specs=pl.BlockSpec((TB, _D), lambda i: (i, 0)),
        compiler_params=pltpu.CompilerParams(
            dimension_semantics=("parallel",),
            vmem_limit_bytes=32 * 1024 * 1024),
        cost_estimate=pl.CostEstimate(
            flops=2 * B_pad * _D * _D * 6,
            transcendentals=B_pad * _D,
            bytes_accessed=4 * (B_pad * (21 + 4 + _D)
                                + grid[0] * _SLAB_ROWS * _D)),
    )(x, eps, slab)

    y = out[:B, :21]
    mu = out[:B, 24:28]
    logvar = out[:B, 28:32]
    return y, mu, logvar


def init_params(key):
    """Parameter init matching the PyTorch module's layer shapes."""
    def linear(key, fan_in, fan_out):
        kw, kb = jax.random.split(key)
        bound = 1.0 / jnp.sqrt(fan_in)
        w = jax.random.uniform(kw, (fan_in, fan_out), jnp.float32, -bound, bound)
        b = jax.random.uniform(kb, (fan_out,), jnp.float32, -bound, bound)
        return w, b

    keys = jax.random.split(key, 7)
    p = {}
    p["w1"], p["b1"] = linear(keys[0], 21, 8)      # encoder[0]
    p["w2"], p["b2"] = linear(keys[1], 8, 8)       # encoder[2]
    p["wmu"], p["bmu"] = linear(keys[2], 8, 4)     # encode_mu[0]
    p["wlv"], p["blv"] = linear(keys[3], 8, 4)     # encode_logvar[0]
    p["wd1"], p["bd1"] = linear(keys[4], 4, 8)     # decoder[0]
    p["wd2"], p["bd2"] = linear(keys[5], 8, 8)     # decoder[2]
    p["wd3"], p["bd3"] = linear(keys[6], 8, 21)    # decoder[4]
    return p


def reference_forward(x, eps, p):
    relu = lambda a: jnp.maximum(a, 0.0)
    h = relu(x @ p["w1"] + p["b1"])
    h = relu(h @ p["w2"] + p["b2"])
    mu = relu(h @ p["wmu"] + p["bmu"])
    logvar = h @ p["wlv"] + p["blv"]
    z = mu + eps * jnp.exp(0.5 * logvar)
    d = relu(z @ p["wd1"] + p["bd1"])
    d = relu(d @ p["wd2"] + p["bd2"])
    return d @ p["wd3"] + p["bd3"], mu, logvar


if __name__ == "__main__":
    key = jax.random.PRNGKey(0)
    k_param, k_x, k_eps = jax.random.split(key, 3)

    B = 8
    x = jax.random.normal(k_x, (B, 21), jnp.float32)
    eps = jax.random.normal(k_eps, (B, 4), jnp.float32)   # reparameterisation noise
    # TODO(synk): torch.randn_like lives inside the module's forward; here the
    # noise is drawn with jax.random outside the kernel for determinism.
    params = init_params(k_param)
    slab = pack_params(params)

    y, mu, logvar = autoencoder_forward(x, eps, slab)
    jax.block_until_ready(y)

    y_ref, mu_ref, lv_ref = reference_forward(x, eps, params)
    assert jnp.allclose(y, y_ref, atol=1e-4, rtol=1e-4)
    assert jnp.allclose(mu, mu_ref, atol=1e-4, rtol=1e-4)
    assert jnp.allclose(logvar, lv_ref, atol=1e-4, rtol=1e-4)

    print("KERNEL_OK")
</pallas_src>

<mosaic_0001>
module attributes {stable_mosaic.version = 11 : i64} {
  func.func @_vae_kernel(%arg0: i32, %arg1: memref<8x21xf32, #tpu.memory_space<vmem>>, %arg2: memref<8x4xf32, #tpu.memory_space<vmem>>, %arg3: memref<200x32xf32, #tpu.memory_space<vmem>>, %arg4: memref<8x32xf32, #tpu.memory_space<vmem>>) attributes {dimension_semantics = [#tpu.dimension_semantics<parallel>], iteration_bounds = array<i64: 1>, scalar_prefetch = 0 : i64, scratch_operands = 0 : i64, tpu.core_type = #tpu.core_type<tc>, window_params = [{transform_indices = @transform_0, window_bounds = array<i64: 8, 21>}, {transform_indices = @transform_1, window_bounds = array<i64: 8, 4>}, {pipeline_mode = #tpu.pipeline_mode<synchronous>, transform_indices = @transform_2, window_bounds = array<i64: 200, 32>}, {transform_indices = @transform_3, window_bounds = array<i64: 8, 32>}]} {
    %c0 = arith.constant 0 : index
    %c0_0 = arith.constant 0 : index
    %0 = vector.load %arg1[%c0, %c0_0] : memref<8x21xf32, #tpu.memory_space<vmem>>, vector<8x21xf32>
    %c0_1 = arith.constant 0 : index
    %c0_2 = arith.constant 0 : index
    %1 = vector.load %arg2[%c0_1, %c0_2] : memref<8x4xf32, #tpu.memory_space<vmem>>, vector<8x4xf32>
    %c0_3 = arith.constant 0 : index
    %c0_4 = arith.constant 0 : index
    %2 = vector.load %arg3[%c0_3, %c0_4] : memref<200x32xf32, #tpu.memory_space<vmem>>, vector<32x32xf32>
    %c32 = arith.constant 32 : index
    %c0_5 = arith.constant 0 : index
    %3 = vector.load %arg3[%c32, %c0_5] : memref<200x32xf32, #tpu.memory_space<vmem>>, vector<32x32xf32>
    %c64 = arith.constant 64 : index
    %c0_6 = arith.constant 0 : index
    %4 = vector.load %arg3[%c64, %c0_6] : memref<200x32xf32, #tpu.memory_space<vmem>>, vector<32x32xf32>
    %c96 = arith.constant 96 : index
    %c0_7 = arith.constant 0 : index
    %5 = vector.load %arg3[%c96, %c0_7] : memref<200x32xf32, #tpu.memory_space<vmem>>, vector<32x32xf32>
    %c128 = arith.constant 128 : index
    %c0_8 = arith.constant 0 : index
    %6 = vector.load %arg3[%c128, %c0_8] : memref<200x32xf32, #tpu.memory_space<vmem>>, vector<32x32xf32>
    %c160 = arith.constant 160 : index
    %c0_9 = arith.constant 0 : index
    %7 = vector.load %arg3[%c160, %c0_9] : memref<200x32xf32, #tpu.memory_space<vmem>>, vector<32x32xf32>
    %c192 = arith.constant 192 : index
    %c0_10 = arith.constant 0 : index
    %8 = vector.load %arg3[%c192, %c0_10] : memref<200x32xf32, #tpu.memory_space<vmem>>, vector<8x32xf32>
    %9 = vector.extract_strided_slice %8 {offsets = [0, 0], sizes = [1, 32], strides = [1, 1]} : vector<8x32xf32> to vector<1x32xf32>
    %10 = vector.extract_strided_slice %8 {offsets = [1, 0], sizes = [1, 32], strides = [1, 1]} : vector<8x32xf32> to vector<1x32xf32>
    %11 = vector.extract_strided_slice %8 {offsets = [2, 0], sizes = [1, 32], strides = [1, 1]} : vector<8x32xf32> to vector<1x32xf32>
    %12 = vector.extract_strided_slice %8 {offsets = [3, 0], sizes = [1, 32], strides = [1, 1]} : vector<8x32xf32> to vector<1x32xf32>
    %13 = vector.extract_strided_slice %8 {offsets = [4, 0], sizes = [1, 32], strides = [1, 1]} : vector<8x32xf32> to vector<1x32xf32>
    %14 = vector.extract_strided_slice %8 {offsets = [5, 0], sizes = [1, 32], strides = [1, 1]} : vector<8x32xf32> to vector<1x32xf32>
    %cst = arith.constant 0.000000e+00 : f32
    %15 = vector.broadcast %cst : f32 to vector<8x11xf32>
    %16 = tpu.concatenate %0, %15 in 1 : vector<8x21xf32>, vector<8x11xf32> -> vector<8x32xf32>
    %cst_11 = arith.constant 0.000000e+00 : f32
    %17 = vector.broadcast %cst_11 : f32 to vector<8x28xf32>
    %18 = tpu.concatenate %17, %1 in 1 : vector<8x28xf32>, vector<8x4xf32> -> vector<8x32xf32>
    %cst_12 = arith.constant dense<0.000000e+00> : vector<8x32xf32>
    %19 = tpu.matmul %16, %2, %cst_12 {dimension_numbers = #tpu.dot_dimension_numbers<[1], [0], [0], [1], [0, 0, 1, 1], [], []>} : vector<8x32xf32>, vector<32x32xf32>, vector<8x32xf32> -> vector<8x32xf32>
    %20 = vector.broadcast %9 : vector<1x32xf32> to vector<8x32xf32>
    %21 = arith.addf %19, %20 : vector<8x32xf32>
    %cst_13 = arith.constant 0.000000e+00 : f32
    %22 = vector.broadcast %cst_13 : f32 to vector<8x32xf32>
    %23 = arith.maximumf %21, %22 : vector<8x32xf32>
    %cst_14 = arith.constant dense<0.000000e+00> : vector<8x32xf32>
    %24 = tpu.matmul %23, %3, %cst_14 {dimension_numbers = #tpu.dot_dimension_numbers<[1], [0], [0], [1], [0, 0, 1, 1], [], []>} : vector<8x32xf32>, vector<32x32xf32>, vector<8x32xf32> -> vector<8x32xf32>
    %25 = vector.broadcast %10 : vector<1x32xf32> to vector<8x32xf32>
    %26 = arith.addf %24, %25 : vector<8x32xf32>
    %cst_15 = arith.constant 0.000000e+00 : f32
    %27 = vector.broadcast %cst_15 : f32 to vector<8x32xf32>
    %28 = arith.maximumf %26, %27 : vector<8x32xf32>
    %cst_16 = arith.constant dense<0.000000e+00> : vector<8x32xf32>
    %29 = tpu.matmul %28, %4, %cst_16 {dimension_numbers = #tpu.dot_dimension_numbers<[1], [0], [0], [1], [0, 0, 1, 1], [], []>} : vector<8x32xf32>, vector<32x32xf32>, vector<8x32xf32> -> vector<8x32xf32>
    %30 = vector.broadcast %11 : vector<1x32xf32> to vector<8x32xf32>
    %31 = arith.addf %29, %30 : vector<8x32xf32>
    %32 = tpu.iota {dimensions = array<i32: 1>} : vector<8x32xi32>
    %c24_i32 = arith.constant 24 : i32
    %33 = vector.broadcast %c24_i32 : i32 to vector<8x32xi32>
    %34 = arith.cmpi sge, %32, %33 : vector<8x32xi32>
    %c28_i32 = arith.constant 28 : i32
    %35 = vector.broadcast %c28_i32 : i32 to vector<8x32xi32>
    %36 = arith.cmpi slt, %32, %35 : vector<8x32xi32>
    %37 = arith.andi %34, %36 : vector<8x32xi1>
    %cst_17 = arith.constant 0.000000e+00 : f32
    %38 = vector.broadcast %cst_17 : f32 to vector<8x32xf32>
    %39 = arith.maximumf %31, %38 : vector<8x32xf32>
    %40 = arith.select %37, %39, %31 : vector<8x32xi1>, vector<8x32xf32>
    %cst_18 = arith.constant 0.000000e+00 : f32
    %41 = vector.broadcast %cst_18 : f32 to vector<8x32xf32>
    %42 = arith.maximumf %31, %41 : vector<8x32xf32>
    %cst_19 = arith.constant 5.000000e-01 : f32
    %43 = vector.broadcast %cst_19 : f32 to vector<8x32xf32>
    %44 = arith.mulf %43, %31 : vector<8x32xf32>
    %45 = math.exp %44 : vector<8x32xf32>
    %46 = arith.mulf %18, %45 : vector<8x32xf32>
    %47 = arith.select %37, %42, %46 : vector<8x32xi1>, vector<8x32xf32>
    %cst_20 = arith.constant dense<0.000000e+00> : vector<8x32xf32>
    %48 = tpu.matmul %47, %5, %cst_20 {dimension_numbers = #tpu.dot_dimension_numbers<[1], [0], [0], [1], [0, 0, 1, 1], [], []>} : vector<8x32xf32>, vector<32x32xf32>, vector<8x32xf32> -> vector<8x32xf32>
    %49 = vector.broadcast %12 : vector<1x32xf32> to vector<8x32xf32>
    %50 = arith.addf %48, %49 : vector<8x32xf32>
    %cst_21 = arith.constant 0.000000e+00 : f32
    %51 = vector.broadcast %cst_21 : f32 to vector<8x32xf32>
    %52 = arith.maximumf %50, %51 : vector<8x32xf32>
    %cst_22 = arith.constant dense<0.000000e+00> : vector<8x32xf32>
    %53 = tpu.matmul %52, %6, %cst_22 {dimension_numbers = #tpu.dot_dimension_numbers<[1], [0], [0], [1], [0, 0, 1, 1], [], []>} : vector<8x32xf32>, vector<32x32xf32>, vector<8x32xf32> -> vector<8x32xf32>
    %54 = vector.broadcast %13 : vector<1x32xf32> to vector<8x32xf32>
    %55 = arith.addf %53, %54 : vector<8x32xf32>
    %cst_23 = arith.constant 0.000000e+00 : f32
    %56 = vector.broadcast %cst_23 : f32 to vector<8x32xf32>
    %57 = arith.maximumf %55, %56 : vector<8x32xf32>
    %cst_24 = arith.constant dense<0.000000e+00> : vector<8x32xf32>
    %58 = tpu.matmul %57, %7, %cst_24 {dimension_numbers = #tpu.dot_dimension_numbers<[1], [0], [0], [1], [0, 0, 1, 1], [], []>} : vector<8x32xf32>, vector<32x32xf32>, vector<8x32xf32> -> vector<8x32xf32>
    %59 = vector.broadcast %14 : vector<1x32xf32> to vector<8x32xf32>
    %60 = arith.addf %58, %59 : vector<8x32xf32>
    %61 = arith.addf %60, %40 : vector<8x32xf32>
    %c0_25 = arith.constant 0 : index
    %c0_26 = arith.constant 0 : index
    %62 = vector.load %arg4[%c0_25, %c0_26] : memref<8x32xf32, #tpu.memory_space<vmem>>, vector<8x32xf32>
    tpu.vector_store %arg4[%c0_25, %c0_26], %61 {strides = array<i32>} : memref<8x32xf32, #tpu.memory_space<vmem>>, vector<8x32xf32>,
    return
  }
  func.func @transform_0(%arg0: i32) -> (i32, i32) {
    %c0_i32 = arith.constant 0 : i32
    %c0_i32_0 = arith.constant 0 : i32
    return %arg0, %c0_i32 : i32, i32
  }
  func.func @transform_1(%arg0: i32) -> (i32, i32) {
    %c0_i32 = arith.constant 0 : i32
    %c0_i32_0 = arith.constant 0 : i32
    return %arg0, %c0_i32 : i32, i32
  }
  func.func @transform_2(%arg0: i32) -> (i32, i32) {
    %c0_i32 = arith.constant 0 : i32
    %c0_i32_0 = arith.constant 0 : i32
    %c0_i32_1 = arith.constant 0 : i32
    return %c0_i32, %c0_i32_0 : i32, i32
  }
  func.func @transform_3(%arg0: i32) -> (i32, i32) {
    %c0_i32 = arith.constant 0 : i32
    %c0_i32_0 = arith.constant 0 : i32
    return %arg0, %c0_i32 : i32, i32
  }
}

</mosaic_0001>

<llo_original>
// kernel: tpu_custom_call.1
$region0: #{tpu_custom_call.1}
  #allocation0 [shape = 'u32[]', space=smem, size = 0x4, offset = 0x4, fixed_abs, tag = 'smem constant byte address 0x4 - core index']
  #allocation1 [shape = 'u32[144,128]{1,0:T(1,128)}', space=vmem, size = 0x12000, scoped, tag = 'internal scratch']
  %s0 = inlined_call_operand.vmem [shape: f32[8,21], index: 0, kind: input, shape index: {}]
  %s1 = inlined_call_operand.vmem [shape: f32[8,4], index: 1, kind: input, shape index: {}]
  %s2 = inlined_call_operand.vmem [shape: f32[200,32], index: 2, kind: input, shape index: {}]
  %s3 = inlined_call_operand.hbm [shape: f32[8,32], index: 3, kind: output, shape index: {}]
  %s4 = sld [smem:[#allocation0]]
  $region22: #{tpu_custom_call.1} parent=0
    _
  %s6 = ssub.s32 1, %s4
  %s7 = scalar_select 0, %s6, %s4
  $region1: #{tpu_custom_call.1} parent=0
    #allocation2 [shape = 'u8[4096]{0}', space=vmem, size = 0x1000, scoped, tag = 'output window, operand 0, single buffered']
    #allocation3 [shape = 's32[1]{0}', space=sflag, size = 0x4, scoped, tag = 'scoped memory for tpu_custom_call.1']
    %8 = vsyncpa [#allocation3], 0
    // Predicated region
    $region2: #{tpu_custom_call.1} parent=1 // pred_check
      _
    $region3: #{tpu_custom_call.1} parent=1 // pred_check_branch
      %10 = sbr.rel (0) target = $region5
    $region4: #{tpu_custom_call.1} parent=1 // pred_region
      _
    $region5: #{tpu_custom_call.1} parent=1 // pred_fallthru
      _
    // Predicated region
    $region6: #{tpu_custom_call.1} parent=1 // pred_check
      _
    $region7: #{tpu_custom_call.1} parent=1 // pred_check_branch
      %12 = sbr.rel (0) target = $region9
    $region8: #{tpu_custom_call.1} parent=1 // pred_region
      _
    $region9: #{tpu_custom_call.1} parent=1 // pred_fallthru
      _
    // Predicated region
    $region10: #{tpu_custom_call.1} parent=1 // pred_check
      _
    $region11: #{tpu_custom_call.1} parent=1 // pred_check_branch
      %14 = sbr.rel (0) target = $region13
    $region12: #{tpu_custom_call.1} parent=1 // pred_region
      _
    $region13: #{tpu_custom_call.1} parent=1 // pred_fallthru
      _
    %v15 = vld [vmem:[%s0] sm:$0xff]
    %v16 = vld [vmem:[%s1] sm:$0xff]
    %v17 = vld [vmem:[%s2] sm:$0xff]
    %v18 = vld [vmem:[%s2 + $0x8] sm:$0xff]
    %v19 = vld [vmem:[%s2 + $0x10] sm:$0xff]
    %v20 = vld [vmem:[%s2 + $0x18] sm:$0xff]
    %v21 = vld [vmem:[%s2 + $0x20] sm:$0xff]
    %v22 = vld [vmem:[%s2 + $0x28] sm:$0xff]
    %v23 = vld [vmem:[%s2 + $0x30] sm:$0xff]
    %v24 = vld [vmem:[%s2 + $0x38] sm:$0xff]
    %v25 = vld [vmem:[%s2 + $0x40] sm:$0xff]
    %v26 = vld [vmem:[%s2 + $0x48] sm:$0xff]
    %v27 = vld [vmem:[%s2 + $0x50] sm:$0xff]
    %v28 = vld [vmem:[%s2 + $0x58] sm:$0xff]
    %v29 = vld [vmem:[%s2 + $0x60] sm:$0xff]
    %v30 = vld [vmem:[%s2 + $0x68] sm:$0xff]
    %v31 = vld [vmem:[%s2 + $0x70] sm:$0xff]
    %v32 = vld [vmem:[%s2 + $0x78] sm:$0xff]
    %v33 = vld [vmem:[%s2 + $0x80] sm:$0xff]
    %v34 = vld [vmem:[%s2 + $0x88] sm:$0xff]
    %v35 = vld [vmem:[%s2 + $0x90] sm:$0xff]
    %v36 = vld [vmem:[%s2 + $0x98] sm:$0xff]
    %v37 = vld [vmem:[%s2 + $0xa0] sm:$0xff]
    %v38 = vld [vmem:[%s2 + $0xa8] sm:$0xff]
    %v39 = vld [vmem:[%s2 + $0xb0] sm:$0xff]
    %v40 = vld [vmem:[%s2 + $0xb8] sm:$0xff]
    %v41 = vld [vmem:[%s2 + $0xc0] sm:$0xff]
    %vm42 = vcmask 171008
    %v43 = vsel %vm42, %v15, 0.0
    %45 = vrot.lane.b32.xlu0 %v16, 28
    %v46 = vpop.permute.xlu0 %45
    %vm48 = vcmask 228352
    %v49 = vsel %vm48, 0.0, %v46
    %v50 = vlaneseq
    %v51 = vshrl.u32 %v50, 7
    %v52 = vsub.s32 0, %v51
    %v53 = vrot.slane %v41, %v52
    %vm54 = vcmask 261120
    %v56 = vsel %vm54, %v43, 0
    %58 = vmatprep.subr.mxu0 0.0
    %59 = vmatpush1.msra.mxu0 %v17
    %60 = vmatprep.subr.mxu0 0.0
    %61 = vmatpush1.msra.mxu0 %v18
    %62 = vmatprep.subr.mxu0 0.0
    %63 = vmatpush1.msra.mxu0 %v19
    %64 = vmatprep.subr.mxu0 0.0
    %65 = vmatpush1.msra.mxu0 %v20
    %66 = vmatprep.subr.mxu0 0.0
    %67 = vmatpush1.msra.mxu0 0.0
    %68 = vmatprep.subr.mxu0 0.0
    %69 = vmatpush1.msra.mxu0 0.0
    %70 = vmatprep.subr.mxu0 0.0
    %71 = vmatpush1.msra.mxu0 0.0
    %72 = vmatprep.subr.mxu0 0.0
    %73 = vmatpush1.msra.mxu0 0.0
    %74 = vmatprep.subr.mxu0 0.0
    %75 = vmatpush1.msra.mxu0 0.0
    %76 = vmatprep.subr.mxu0 0.0
    %77 = vmatpush1.msra.mxu0 0.0
    %78 = vmatprep.subr.mxu0 0.0
    %79 = vmatpush1.msra.mxu0 0.0
    %80 = vmatprep.subr.mxu0 0.0
    %81 = vmatpush1.msra.mxu0 0.0
    %82 = vmatprep.subr.mxu0 0.0
    %83 = vmatpush1.msra.mxu0 0.0
    %84 = vmatprep.subr.mxu0 0.0
    %85 = vmatpush1.msra.mxu0 0.0
    %86 = vmatprep.subr.mxu0 0.0
    %87 = vmatpush1.msra.mxu0 0.0
    %88 = vmatprep.subr.mxu0 0.0
    %89 = vmatpush1.msra.mxu0 0.0
    %90 = vmatprep.subr.mxu0 0.0
    %91 = vmatpush1.msra.mxu0 0.0
    %92 = vmatprep.subr.mxu0 0.0
    %93 = vmatpush1.msra.mxu0 0.0
    %94 = vmatprep.subr.mxu0 0.0
    %95 = vmatpush1.msra.mxu0 0.0
    %96 = vmatprep.subr.mxu0 0.0
    %97 = vmatpush1.msra.mxu0 0.0
    %98 = vmatprep.subr.mxu0 0.0
    %99 = vmatpush1.msra.mxu0 0.0
    %100 = vmatprep.subr.mxu0 0.0
    %101 = vmatpush1.msra.mxu0 0.0
    %102 = vmatprep.subr.mxu0 0.0
    %103 = vmatpush1.msra.mxu0 0.0
    %104 = vmatprep.subr.mxu0 0.0
    %105 = vmatpush1.msra.mxu0 0.0
    %106 = vmatprep.subr.mxu0 0.0
    %107 = vmatpush1.msra.mxu0 0.0
    %108 = vmatprep.subr.mxu0 0.0
    %109 = vmatpush1.msra.mxu0 0.0
    %110 = vmatprep.subr.mxu0 0.0
    %111 = vmatpush1.msra.mxu0 0.0
    %112 = vmatprep.subr.mxu0 0.0
    %113 = vmatpush1.msra.mxu0 0.0
    %114 = vmatprep.subr.mxu0 0.0
    %115 = vmatpush1.msra.mxu0 0.0
    %116 = vmatprep.subr.mxu0 0.0
    %117 = vmatpush1.msra.mxu0 0.0
    %118 = vmatprep.subr.mxu0 0.0
    %119 = vmatpush1.msra.mxu0 0.0
    %120 = vmatprep.subr.mxu0 0.0
    %121 = vmatpush1.msra.mxu0 0.0
    %122 = vmatprep.mubr.f32.mxu0 0.0
    %123 = vmatmul.mubr.f32.gmra.mrb[0].mxu0 %v56
    %v124 = vpop.f32.mrb[0].mxu0
    %v125 = vadd.f32 %v53, %v124
    %v126 = vpop.f32.mrb[0].mxu0
    %127 = vdwg.mxu0
    %v128 = vmax.f32 %v125, 0.0
    %v129 = vlaneseq
    %v130 = vshrl.u32 %v129, 7
    %v131 = vsub.s32 1, %v130
    %v132 = vrot.slane %v41, %v131
    %v134 = vsel %vm54, %v128, 0
    %136 = vmatprep.subr.mxu0 0.0
    %137 = vmatpush1.msra.mxu0 %v21
    %138 = vmatprep.subr.mxu0 0.0
    %139 = vmatpush1.msra.mxu0 %v22
    %140 = vmatprep.subr.mxu0 0.0
    %141 = vmatpush1.msra.mxu0 %v23
    %142 = vmatprep.subr.mxu0 0.0
    %143 = vmatpush1.msra.mxu0 %v24
    %144 = vmatprep.subr.mxu0 0.0
    %145 = vmatpush1.msra.mxu0 0.0
    %146 = vmatprep.subr.mxu0 0.0
    %147 = vmatpush1.msra.mxu0 0.0
    %148 = vmatprep.subr.mxu0 0.0
    %149 = vmatpush1.msra.mxu0 0.0
    %150 = vmatprep.subr.mxu0 0.0
    %151 = vmatpush1.msra.mxu0 0.0
    %152 = vmatprep.subr.mxu0 0.0
    %153 = vmatpush1.msra.mxu0 0.0
    %154 = vmatprep.subr.mxu0 0.0
    %155 = vmatpush1.msra.mxu0 0.0
    %156 = vmatprep.subr.mxu0 0.0
    %157 = vmatpush1.msra.mxu0 0.0
    %158 = vmatprep.subr.mxu0 0.0
    %159 = vmatpush1.msra.mxu0 0.0
    %160 = vmatprep.subr.mxu0 0.0
    %161 = vmatpush1.msra.mxu0 0.0
    %162 = vmatprep.subr.mxu0 0.0
    %163 = vmatpush1.msra.mxu0 0.0
    %164 = vmatprep.subr.mxu0 0.0
    %165 = vmatpush1.msra.mxu0 0.0
    %166 = vmatprep.subr.mxu0 0.0
    %167 = vmatpush1.msra.mxu0 0.0
    %168 = vmatprep.subr.mxu0 0.0
    %169 = vmatpush1.msra.mxu0 0.0
    %170 = vmatprep.subr.mxu0 0.0
    %171 = vmatpush1.msra.mxu0 0.0
    %172 = vmatprep.subr.mxu0 0.0
    %173 = vmatpush1.msra.mxu0 0.0
    %174 = vmatprep.subr.mxu0 0.0
    %175 = vmatpush1.msra.mxu0 0.0
    %176 = vmatprep.subr.mxu0 0.0
    %177 = vmatpush1.msra.mxu0 0.0
    %178 = vmatprep.subr.mxu0 0.0
    %179 = vmatpush1.msra.mxu0 0.0
    %180 = vmatprep.subr.mxu0 0.0
    %181 = vmatpush1.msra.mxu0 0.0
    %182 = vmatprep.subr.mxu0 0.0
    %183 = vmatpush1.msra.mxu0 0.0
    %184 = vmatprep.subr.mxu0 0.0
    %185 = vmatpush1.msra.mxu0 0.0
    %186 = vmatprep.subr.mxu0 0.0
    %187 = vmatpush1.msra.mxu0 0.0
    %188 = vmatprep.subr.mxu0 0.0
    %189 = vmatpush1.msra.mxu0 0.0
    %190 = vmatprep.subr.mxu0 0.0
    %191 = vmatpush1.msra.mxu0 0.0
    %192 = vmatprep.subr.mxu0 0.0
    %193 = vmatpush1.msra.mxu0 0.0
    %194 = vmatprep.subr.mxu0 0.0
    %195 = vmatpush1.msra.mxu0 0.0
    %196 = vmatprep.subr.mxu0 0.0
    %197 = vmatpush1.msra.mxu0 0.0
    %198 = vmatprep.subr.mxu0 0.0
    %199 = vmatpush1.msra.mxu0 0.0
    %200 = vmatprep.mubr.f32.mxu0 0.0
    %201 = vmatmul.mubr.f32.gmra.mrb[0].mxu0 %v134
    %v202 = vpop.f32.mrb[0].mxu0
    %v203 = vadd.f32 %v132, %v202
    %v204 = vpop.f32.mrb[0].mxu0
    %205 = vdwg.mxu0
    %v206 = vmax.f32 %v203, 0.0
    %v207 = vlaneseq
    %v208 = vshrl.u32 %v207, 7
    %v209 = vsub.s32 2, %v208
    %v210 = vrot.slane %v41, %v209
    %v212 = vsel %vm54, %v206, 0
    %214 = vmatprep.subr.mxu0 0.0
    %215 = vmatpush1.msra.mxu0 %v25
    %216 = vmatprep.subr.mxu0 0.0
    %217 = vmatpush1.msra.mxu0 %v26
    %218 = vmatprep.subr.mxu0 0.0
    %219 = vmatpush1.msra.mxu0 %v27
    %220 = vmatprep.subr.mxu0 0.0
    %221 = vmatpush1.msra.mxu0 %v28
    %222 = vmatprep.subr.mxu0 0.0
    %223 = vmatpush1.msra.mxu0 0.0
    %224 = vmatprep.subr.mxu0 0.0
    %225 = vmatpush1.msra.mxu0 0.0
    %226 = vmatprep.subr.mxu0 0.0
    %227 = vmatpush1.msra.mxu0 0.0
    %228 = vmatprep.subr.mxu0 0.0
    %229 = vmatpush1.msra.mxu0 0.0
    %230 = vmatprep.subr.mxu0 0.0
    %231 = vmatpush1.msra.mxu0 0.0
    %232 = vmatprep.subr.mxu0 0.0
    %233 = vmatpush1.msra.mxu0 0.0
    %234 = vmatprep.subr.mxu0 0.0
    %235 = vmatpush1.msra.mxu0 0.0
    %236 = vmatprep.subr.mxu0 0.0
    %237 = vmatpush1.msra.mxu0 0.0
    %238 = vmatprep.subr.mxu0 0.0
    %239 = vmatpush1.msra.mxu0 0.0
    %240 = vmatprep.subr.mxu0 0.0
    %241 = vmatpush1.msra.mxu0 0.0
    %242 = vmatprep.subr.mxu0 0.0
    %243 = vmatpush1.msra.mxu0 0.0
    %244 = vmatprep.subr.mxu0 0.0
    %245 = vmatpush1.msra.mxu0 0.0
    %246 = vmatprep.subr.mxu0 0.0
    %247 = vmatpush1.msra.mxu0 0.0
    %248 = vmatprep.subr.mxu0 0.0
    %249 = vmatpush1.msra.mxu0 0.0
    %250 = vmatprep.subr.mxu0 0.0
    %251 = vmatpush1.msra.mxu0 0.0
    %252 = vmatprep.subr.mxu0 0.0
    %253 = vmatpush1.msra.mxu0 0.0
    %254 = vmatprep.subr.mxu0 0.0
    %255 = vmatpush1.msra.mxu0 0.0
    %256 = vmatprep.subr.mxu0 0.0
    %257 = vmatpush1.msra.mxu0 0.0
    %258 = vmatprep.subr.mxu0 0.0
    %259 = vmatpush1.msra.mxu0 0.0
    %260 = vmatprep.subr.mxu0 0.0
    %261 = vmatpush1.msra.mxu0 0.0
    %262 = vmatprep.subr.mxu0 0.0
    %263 = vmatpush1.msra.mxu0 0.0
    %264 = vmatprep.subr.mxu0 0.0
    %265 = vmatpush1.msra.mxu0 0.0
    %266 = vmatprep.subr.mxu0 0.0
    %267 = vmatpush1.msra.mxu0 0.0
    %268 = vmatprep.subr.mxu0 0.0
    %269 = vmatpush1.msra.mxu0 0.0
    %270 = vmatprep.subr.mxu0 0.0
    %271 = vmatpush1.msra.mxu0 0.0
    %272 = vmatprep.subr.mxu0 0.0
    %273 = vmatpush1.msra.mxu0 0.0
    %274 = vmatprep.subr.mxu0 0.0
    %275 = vmatpush1.msra.mxu0 0.0
    %276 = vmatprep.subr.mxu0 0.0
    %277 = vmatpush1.msra.mxu0 0.0
    %278 = vmatprep.mubr.f32.mxu0 0.0
    %279 = vmatmul.mubr.f32.gmra.mrb[0].mxu0 %v212
    %v280 = vpop.f32.mrb[0].mxu0
    %v281 = vadd.f32 %v210, %v280
    %v282 = vpop.f32.mrb[0].mxu0
    %283 = vdwg.mxu0
    %v284 = vlaneseq
    %v285 = vand.u32 %v284, 127
    %vm286 = vcmp.ge.s32.totalorder %v285, 24
    %vm287 = vcmp.lt.s32.totalorder %v285, 28
    %vm288 = vmand %vm286, %vm287
    %v289 = vmax.f32 %v281, 0.0
    %v290 = vsel %vm288, %v289, %v281
    %v291 = vmul.f32 %v281, 0.5
    %v292 = vmul.f32 %v291, 1.442695
    %v293 = vpow.pop %v292
    %v294 = vmul.f32 %v49, %v293
    %v295 = vsel %vm288, %v289, %v294
    %v296 = vlaneseq
    %v297 = vshrl.u32 %v296, 7
    %v298 = vsub.s32 3, %v297
    %v299 = vrot.slane %v41, %v298
    %v301 = vsel %vm54, %v295, 0
    %303 = vmatprep.subr.mxu0 0.0
    %304 = vmatpush1.msra.mxu0 %v29
    %305 = vmatprep.subr.mxu0 0.0
    %306 = vmatpush1.msra.mxu0 %v30
    %307 = vmatprep.subr.mxu0 0.0
    %308 = vmatpush1.msra.mxu0 %v31
    %309 = vmatprep.subr.mxu0 0.0
    %310 = vmatpush1.msra.mxu0 %v32
    %311 = vmatprep.subr.mxu0 0.0
    %312 = vmatpush1.msra.mxu0 0.0
    %313 = vmatprep.subr.mxu0 0.0
    %314 = vmatpush1.msra.mxu0 0.0
    %315 = vmatprep.subr.mxu0 0.0
    %316 = vmatpush1.msra.mxu0 0.0
    %317 = vmatprep.subr.mxu0 0.0
    %318 = vmatpush1.msra.mxu0 0.0
    %319 = vmatprep.subr.mxu0 0.0
    %320 = vmatpush1.msra.mxu0 0.0
    %321 = vmatprep.subr.mxu0 0.0
    %322 = vmatpush1.msra.mxu0 0.0
    %323 = vmatprep.subr.mxu0 0.0
    %324 = vmatpush1.msra.mxu0 0.0
    %325 = vmatprep.subr.mxu0 0.0
    %326 = vmatpush1.msra.mxu0 0.0
    %327 = vmatprep.subr.mxu0 0.0
    %328 = vmatpush1.msra.mxu0 0.0
    %329 = vmatprep.subr.mxu0 0.0
    %330 = vmatpush1.msra.mxu0 0.0
    %331 = vmatprep.subr.mxu0 0.0
    %332 = vmatpush1.msra.mxu0 0.0
    %333 = vmatprep.subr.mxu0 0.0
    %334 = vmatpush1.msra.mxu0 0.0
    %335 = vmatprep.subr.mxu0 0.0
    %336 = vmatpush1.msra.mxu0 0.0
    %337 = vmatprep.subr.mxu0 0.0
    %338 = vmatpush1.msra.mxu0 0.0
    %339 = vmatprep.subr.mxu0 0.0
    %340 = vmatpush1.msra.mxu0 0.0
    %341 = vmatprep.subr.mxu0 0.0
    %342 = vmatpush1.msra.mxu0 0.0
    %343 = vmatprep.subr.mxu0 0.0
    %344 = vmatpush1.msra.mxu0 0.0
    %345 = vmatprep.subr.mxu0 0.0
    %346 = vmatpush1.msra.mxu0 0.0
    %347 = vmatprep.subr.mxu0 0.0
    %348 = vmatpush1.msra.mxu0 0.0
    %349 = vmatprep.subr.mxu0 0.0
    %350 = vmatpush1.msra.mxu0 0.0
    %351 = vmatprep.subr.mxu0 0.0
    %352 = vmatpush1.msra.mxu0 0.0
    %353 = vmatprep.subr.mxu0 0.0
    %354 = vmatpush1.msra.mxu0 0.0
    %355 = vmatprep.subr.mxu0 0.0
    %356 = vmatpush1.msra.mxu0 0.0
    %357 = vmatprep.subr.mxu0 0.0
    %358 = vmatpush1.msra.mxu0 0.0
    %359 = vmatprep.subr.mxu0 0.0
    %360 = vmatpush1.msra.mxu0 0.0
    %361 = vmatprep.subr.mxu0 0.0
    %362 = vmatpush1.msra.mxu0 0.0
    %363 = vmatprep.subr.mxu0 0.0
    %364 = vmatpush1.msra.mxu0 0.0
    %365 = vmatprep.subr.mxu0 0.0
    %366 = vmatpush1.msra.mxu0 0.0
    %367 = vmatprep.mubr.f32.mxu0 0.0
    %368 = vmatmul.mubr.f32.gmra.mrb[0].mxu0 %v301
    %v369 = vpop.f32.mrb[0].mxu0
    %v370 = vadd.f32 %v299, %v369
    %v371 = vpop.f32.mrb[0].mxu0
    %372 = vdwg.mxu0
    %v373 = vmax.f32 %v370, 0.0
    %v374 = vlaneseq
    %v375 = vshrl.u32 %v374, 7
    %v376 = vsub.s32 4, %v375
    %v377 = vrot.slane %v41, %v376
    %v379 = vsel %vm54, %v373, 0
    %381 = vmatprep.subr.mxu0 0.0
    %382 = vmatpush1.msra.mxu0 %v33
    %383 = vmatprep.subr.mxu0 0.0
    %384 = vmatpush1.msra.mxu0 %v34
    %385 = vmatprep.subr.mxu0 0.0
    %386 = vmatpush1.msra.mxu0 %v35
    %387 = vmatprep.subr.mxu0 0.0
    %388 = vmatpush1.msra.mxu0 %v36
    %389 = vmatprep.subr.mxu0 0.0
    %390 = vmatpush1.msra.mxu0 0.0
    %391 = vmatprep.subr.mxu0 0.0
    %392 = vmatpush1.msra.mxu0 0.0
    %393 = vmatprep.subr.mxu0 0.0
    %394 = vmatpush1.msra.mxu0 0.0
    %395 = vmatprep.subr.mxu0 0.0
    %396 = vmatpush1.msra.mxu0 0.0
    %397 = vmatprep.subr.mxu0 0.0
    %398 = vmatpush1.msra.mxu0 0.0
    %399 = vmatprep.subr.mxu0 0.0
    %400 = vmatpush1.msra.mxu0 0.0
    %401 = vmatprep.subr.mxu0 0.0
    %402 = vmatpush1.msra.mxu0 0.0
    %403 = vmatprep.subr.mxu0 0.0
    %404 = vmatpush1.msra.mxu0 0.0
    %405 = vmatprep.subr.mxu0 0.0
    %406 = vmatpush1.msra.mxu0 0.0
    %407 = vmatprep.subr.mxu0 0.0
    %408 = vmatpush1.msra.mxu0 0.0
    %409 = vmatprep.subr.mxu0 0.0
    %410 = vmatpush1.msra.mxu0 0.0
    %411 = vmatprep.subr.mxu0 0.0
    %412 = vmatpush1.msra.mxu0 0.0
    %413 = vmatprep.subr.mxu0 0.0
    %414 = vmatpush1.msra.mxu0 0.0
    %415 = vmatprep.subr.mxu0 0.0
    %416 = vmatpush1.msra.mxu0 0.0
    %417 = vmatprep.subr.mxu0 0.0
    %418 = vmatpush1.msra.mxu0 0.0
    %419 = vmatprep.subr.mxu0 0.0
    %420 = vmatpush1.msra.mxu0 0.0
    %421 = vmatprep.subr.mxu0 0.0
    %422 = vmatpush1.msra.mxu0 0.0
    %423 = vmatprep.subr.mxu0 0.0
    %424 = vmatpush1.msra.mxu0 0.0
    %425 = vmatprep.subr.mxu0 0.0
    %426 = vmatpush1.msra.mxu0 0.0
    %427 = vmatprep.subr.mxu0 0.0
    %428 = vmatpush1.msra.mxu0 0.0
    %429 = vmatprep.subr.mxu0 0.0
    %430 = vmatpush1.msra.mxu0 0.0
    %431 = vmatprep.subr.mxu0 0.0
    %432 = vmatpush1.msra.mxu0 0.0
    %433 = vmatprep.subr.mxu0 0.0
    %434 = vmatpush1.msra.mxu0 0.0
    %435 = vmatprep.subr.mxu0 0.0
    %436 = vmatpush1.msra.mxu0 0.0
    %437 = vmatprep.subr.mxu0 0.0
    %438 = vmatpush1.msra.mxu0 0.0
    %439 = vmatprep.subr.mxu0 0.0
    %440 = vmatpush1.msra.mxu0 0.0
    %441 = vmatprep.subr.mxu0 0.0
    %442 = vmatpush1.msra.mxu0 0.0
    %443 = vmatprep.subr.mxu0 0.0
    %444 = vmatpush1.msra.mxu0 0.0
    %445 = vmatprep.mubr.f32.mxu0 0.0
    %446 = vmatmul.mubr.f32.gmra.mrb[0].mxu0 %v379
    %v447 = vpop.f32.mrb[0].mxu0
    %v448 = vadd.f32 %v377, %v447
    %v449 = vpop.f32.mrb[0].mxu0
    %450 = vdwg.mxu0
    %v451 = vmax.f32 %v448, 0.0
    %v452 = vlaneseq
    %v453 = vshrl.u32 %v452, 7
    %v454 = vsub.s32 5, %v453
    %v455 = vrot.slane %v41, %v454
    %v457 = vsel %vm54, %v451, 0
    %459 = vmatprep.subr.mxu0 0.0
    %460 = vmatpush1.msra.mxu0 %v37
    %461 = vmatprep.subr.mxu0 0.0
    %462 = vmatpush1.msra.mxu0 %v38
    %463 = vmatprep.subr.mxu0 0.0
    %464 = vmatpush1.msra.mxu0 %v39
    %465 = vmatprep.subr.mxu0 0.0
    %466 = vmatpush1.msra.mxu0 %v40
    %467 = vmatprep.subr.mxu0 0.0
    %468 = vmatpush1.msra.mxu0 0.0
    %469 = vmatprep.subr.mxu0 0.0
    %470 = vmatpush1.msra.mxu0 0.0
    %471 = vmatprep.subr.mxu0 0.0
    %472 = vmatpush1.msra.mxu0 0.0
    %473 = vmatprep.subr.mxu0 0.0
    %474 = vmatpush1.msra.mxu0 0.0
    %475 = vmatprep.subr.mxu0 0.0
    %476 = vmatpush1.msra.mxu0 0.0
    %477 = vmatprep.subr.mxu0 0.0
    %478 = vmatpush1.msra.mxu0 0.0
    %479 = vmatprep.subr.mxu0 0.0
    %480 = vmatpush1.msra.mxu0 0.0
    %481 = vmatprep.subr.mxu0 0.0
    %482 = vmatpush1.msra.mxu0 0.0
    %483 = vmatprep.subr.mxu0 0.0
    %484 = vmatpush1.msra.mxu0 0.0
    %485 = vmatprep.subr.mxu0 0.0
    %486 = vmatpush1.msra.mxu0 0.0
    %487 = vmatprep.subr.mxu0 0.0
    %488 = vmatpush1.msra.mxu0 0.0
    %489 = vmatprep.subr.mxu0 0.0
    %490 = vmatpush1.msra.mxu0 0.0
    %491 = vmatprep.subr.mxu0 0.0
    %492 = vmatpush1.msra.mxu0 0.0
    %493 = vmatprep.subr.mxu0 0.0
    %494 = vmatpush1.msra.mxu0 0.0
    %495 = vmatprep.subr.mxu0 0.0
    %496 = vmatpush1.msra.mxu0 0.0
    %497 = vmatprep.subr.mxu0 0.0
    %498 = vmatpush1.msra.mxu0 0.0
    %499 = vmatprep.subr.mxu0 0.0
    %500 = vmatpush1.msra.mxu0 0.0
    %501 = vmatprep.subr.mxu0 0.0
    %502 = vmatpush1.msra.mxu0 0.0
    %503 = vmatprep.subr.mxu0 0.0
    %504 = vmatpush1.msra.mxu0 0.0
    %505 = vmatprep.subr.mxu0 0.0
    %506 = vmatpush1.msra.mxu0 0.0
    %507 = vmatprep.subr.mxu0 0.0
    %508 = vmatpush1.msra.mxu0 0.0
    %509 = vmatprep.subr.mxu0 0.0
    %510 = vmatpush1.msra.mxu0 0.0
    %511 = vmatprep.subr.mxu0 0.0
    %512 = vmatpush1.msra.mxu0 0.0
    %513 = vmatprep.subr.mxu0 0.0
    %514 = vmatpush1.msra.mxu0 0.0
    %515 = vmatprep.subr.mxu0 0.0
    %516 = vmatpush1.msra.mxu0 0.0
    %517 = vmatprep.subr.mxu0 0.0
    %518 = vmatpush1.msra.mxu0 0.0
    %519 = vmatprep.subr.mxu0 0.0
    %520 = vmatpush1.msra.mxu0 0.0
    %521 = vmatprep.subr.mxu0 0.0
    %522 = vmatpush1.msra.mxu0 0.0
    %523 = vmatprep.mubr.f32.mxu0 0.0
    %524 = vmatmul.mubr.f32.gmra.mrb[0].mxu0 %v457
    %v525 = vpop.f32.mrb[0].mxu0
    %v526 = vadd.f32 %v455, %v525
    %v527 = vpop.f32.mrb[0].mxu0
    %528 = vdwg.mxu0
    %v529 = vadd.f32 %v526, %v290
    %530 = vst.msk [vmem:[#allocation2] sm:$0xff] %vm54, %v529
    // Predicated region
    $region14: #{tpu_custom_call.1} parent=1 // pred_check
      _
    $region15: #{tpu_custom_call.1} parent=1 // pred_check_branch
      %532 = sbr.rel (0) target = $region17
    $region16: #{tpu_custom_call.1} parent=1 // pred_region
      %s534 = ssub.s32 128, 128
      %535 = vsyncadd [#allocation3], %s534
      %s537 = sshll.u32 [#allocation2], 4
      %s538 = int_to_ptr.vmem [resolvable:$true] %s537
      %540 = dma.vmem_to_hbm [thread:$0]  %s538, 128, %s3, [#allocation3]
    $region17: #{tpu_custom_call.1} parent=1 // pred_fallthru
      _
    // Predicated region
    $region18: #{tpu_custom_call.1} parent=1 // pred_check
      _
    $region19: #{tpu_custom_call.1} parent=1 // pred_check_branch
      %542 = sbr.rel (0) target = $region21
    $region20: #{tpu_custom_call.1} parent=1 // pred_region
      %543 = dma.done [#allocation3], 128
    $region21: #{tpu_custom_call.1} parent=1 // pred_fallthru
      _
    %544 = vsyncpa [#allocation3], 1

</llo_original>
